<compile_context>
chip_gen: v7x
topology: tpu7x:2x2x1
jax: 0.10.0
libtpu: 0.0.40
codegen_flags: <defaults>
</compile_context>

<pallas_src>
import jax
import jax.numpy as jnp
from jax.experimental import pallas as pl
from jax.experimental.pallas import tpu as pltpu


# ----------------------------- kernels ------------------------------------ #

def _sse_kernel_unrolled(x_ref, w_ref, b_ref, o_ref):
    """Small-C path.  x_ref/o_ref: (1, C, TR, 128) VMEM; w_ref: (C,) SMEM f32;
    b_ref: (1,) SMEM f32.  1x1x1 conv == per-voxel weighted sum over C, done as
    an unrolled scalar*vector MAC chain on the VPU (no MXU, no weight DMA)."""
    x = x_ref[...]
    xf = x.astype(jnp.float32)
    C = xf.shape[1]
    s = xf[:, 0:1] * w_ref[0]
    for c in range(1, C):
        s = s + xf[:, c:c + 1] * w_ref[c]
    gate = jax.nn.sigmoid(s + b_ref[0])              # (1, 1, TR, 128)
    o_ref[...] = (xf * gate).astype(o_ref.dtype)     # broadcast over channels


def _sse_kernel_reduce(x_ref, w_ref, b_ref, o_ref):
    """Larger-C path.  x_ref/o_ref: (1, C, TR, 128) VMEM; w_ref: (1, C, 1, 1)
    VMEM f32; b_ref: (1,) SMEM f32.  Broadcast multiply + channel-axis sum
    avoids a C-deep dependent-add chain; still no MXU."""
    xf = x_ref[...].astype(jnp.float32)
    s = jnp.sum(xf * w_ref[...], axis=1, keepdims=True)   # (1, 1, TR, 128)
    gate = jax.nn.sigmoid(s + b_ref[0])
    o_ref[...] = (xf * gate).astype(o_ref.dtype)


# ----------------------------- wrapper ------------------------------------ #

def _round_up(n, m):
    return ((n + m - 1) // m) * m


def _pick_row_tile(R, sub, bytes_per_row, target_block_bytes, batch):
    """Largest row tile (multiple of `sub`) dividing R within the byte budget,
    while keeping >=4 total grid steps when possible (feeds both v7x TCs)."""
    if R % sub != 0:
        # Full-extent rows block (always legal); caller guarantees it fits.
        return R
    budget_rows = max(sub, (target_block_bytes // bytes_per_row) // sub * sub)
    min_steps = 4
    need_tiles = max(1, -(-min_steps // max(1, batch)))        # ceil
    if R >= sub * need_tiles:
        cap_rows = max(sub, (R // need_tiles) // sub * sub)
    else:
        cap_rows = R
    tile = min(R, budget_rows, cap_rows)
    tile = max(sub, (tile // sub) * sub)
    while R % tile != 0:
        tile -= sub
    return tile


def spatial_se_3d(x, weight, bias, *, target_block_bytes=4 << 20,
                  donate_input=False):
    """x: (B, C, D, H, W); weight: reshapeable to (C,); bias: scalar/(1,).
    Returns the SpatialSE output in x.dtype."""
    B, C, D, H, W = x.shape
    S = D * H * W
    dtype = x.dtype
    itemsize = jnp.dtype(dtype).itemsize
    sub = max(8, 32 // itemsize)        # sublane granularity: f32 8, bf16 16
    lane = 128
    bytes_per_row = C * lane * itemsize

    # --- lay out spatial axis as (rows, 128) lanes, padding if needed ------ #
    x3 = x.reshape(B, C, S)
    S_pad = _round_up(S, lane)
    R = S_pad // lane
    if R % sub != 0 and R * bytes_per_row > target_block_bytes:
        # Rows can't be tiled in sub-multiples and a full-row block would blow
        # the budget -> pad further so rows become a sub multiple.
        S_pad = _round_up(S, lane * sub)
        R = S_pad // lane
    if S_pad != S:
        x3 = jnp.pad(x3, ((0, 0), (0, 0), (0, S_pad - S)))
    x4 = x3.reshape(B, C, R, lane)

    tile_r = _pick_row_tile(R, sub, bytes_per_row, target_block_bytes, B)
    grid = (B, R // tile_r)

    # --- conv params (always f32 scalars/vector) --------------------------- #
    w = jnp.asarray(weight, dtype=jnp.float32).reshape(C)
    b = jnp.reshape(jnp.asarray(bias, dtype=jnp.float32), (1,))

    if C < 8:
        kernel = _sse_kernel_unrolled
        w_arg = w
        w_spec = pl.BlockSpec(memory_space=pltpu.SMEM)
    else:
        kernel = _sse_kernel_reduce
        w_arg = w.reshape(1, C, 1, 1)
        w_spec = pl.BlockSpec((1, C, 1, 1), lambda bb, i: (0, 0, 0, 0))

    block_bytes = C * tile_r * lane * itemsize
    # double-buffered input + output blocks, plus headroom (safe on v5e..v7x).
    vmem_limit = max(32 << 20, 4 * block_bytes + (4 << 20))

    out4 = pl.pallas_call(
        kernel,
        out_shape=jax.ShapeDtypeStruct((B, C, R, lane), dtype),
        grid_spec=pltpu.PrefetchScalarGridSpec(
            num_scalar_prefetch=0,
            grid=grid,
            in_specs=[
                pl.BlockSpec((1, C, tile_r, lane), lambda bb, i: (bb, 0, i, 0)),
                w_spec,                                     # conv weight
                pl.BlockSpec(memory_space=pltpu.SMEM),      # conv bias (1,)
            ],
            out_specs=pl.BlockSpec((1, C, tile_r, lane),
                                   lambda bb, i: (bb, 0, i, 0)),
        ),
        compiler_params=pltpu.CompilerParams(
            dimension_semantics=("parallel", "parallel"),
            vmem_limit_bytes=vmem_limit),
        input_output_aliases=({0: 0} if donate_input else {}),
    )(x4, w_arg, b)

    out3 = out4.reshape(B, C, S_pad)
    if S_pad != S:
        out3 = out3[:, :, :S]
    return out3.reshape(B, C, D, H, W)


# ----------------------------- reference ---------------------------------- #

def _reference(x, weight, bias):
    xf = x.astype(jnp.float32)
    wf = jnp.asarray(weight, dtype=jnp.float32).reshape(-1)
    bf = jnp.asarray(bias, dtype=jnp.float32).reshape(())
    gate = jax.nn.sigmoid(jnp.einsum("bcdhw,c->bdhw", xf, wf) + bf)
    return (xf * gate[:, None, :, :, :]).astype(x.dtype)


if __name__ == "__main__":
    key = jax.random.PRNGKey(0)

    # Case 1: f32, small C (unrolled SMEM-scalar path), 128-aligned spatial.
    k1, k2, k3, key = jax.random.split(key, 4)
    B, C, D, H, W = 2, 4, 16, 16, 16
    x = jax.random.normal(k1, (B, C, D, H, W), dtype=jnp.float32)
    w = jax.random.normal(k2, (C,), dtype=jnp.float32) * 0.1
    b = jax.random.normal(k3, (), dtype=jnp.float32) * 0.1
    out = jax.block_until_ready(spatial_se_3d(x, w, b))
    ref = _reference(x, w, b)
    assert out.shape == x.shape and out.dtype == x.dtype
    assert jnp.allclose(out, ref, atol=1e-5, rtol=1e-5)

    # Case 2: bf16 storage dtype, larger C (VMEM-weight sum-reduce path), B=1.
    k1, k2, k3, key = jax.random.split(key, 4)
    B2, C2, D2, H2, W2 = 1, 16, 8, 8, 8
    xb = jax.random.normal(k1, (B2, C2, D2, H2, W2),
                           dtype=jnp.float32).astype(jnp.bfloat16)
    wb = jax.random.normal(k2, (C2,), dtype=jnp.float32) * 0.1
    bb = jax.random.normal(k3, (), dtype=jnp.float32) * 0.1
    outb = jax.block_until_ready(spatial_se_3d(xb, wb, bb))
    refb = _reference(xb, wb, bb)
    assert outb.shape == xb.shape and outb.dtype == jnp.bfloat16
    assert jnp.allclose(outb.astype(jnp.float32), refb.astype(jnp.float32),
                        atol=2e-2, rtol=2e-2)

    # Case 3: f32, spatial size not a multiple of 128 (lane-padding path).
    k1, k2, k3, key = jax.random.split(key, 4)
    B3, C3, D3, H3, W3 = 2, 4, 5, 5, 5
    xp = jax.random.normal(k1, (B3, C3, D3, H3, W3), dtype=jnp.float32)
    wp = jax.random.normal(k2, (C3,), dtype=jnp.float32) * 0.1
    bp = jax.random.normal(k3, (), dtype=jnp.float32) * 0.1
    outp = jax.block_until_ready(spatial_se_3d(xp, wp, bp))
    refp = _reference(xp, wp, bp)
    assert outp.shape == xp.shape
    assert jnp.allclose(outp, refp, atol=1e-5, rtol=1e-5)

    print("KERNEL_OK")
</pallas_src>

<mosaic_0001>
module attributes {stable_mosaic.version = 11 : i64} {
  func.func @_sse_kernel_unrolled(%arg0: i32, %arg1: i32, %arg2: memref<1x4x16x128xf32, #tpu.memory_space<vmem>>, %arg3: memref<4xf32, #tpu.memory_space<smem>>, %arg4: memref<1xf32, #tpu.memory_space<smem>>, %arg5: memref<1x4x16x128xf32, #tpu.memory_space<vmem>>) attributes {dimension_semantics = [#tpu.dimension_semantics<parallel>, #tpu.dimension_semantics<parallel>], iteration_bounds = array<i64: 2, 2>, scalar_prefetch = 0 : i64, scratch_operands = 0 : i64, tpu.core_type = #tpu.core_type<tc>, window_params = [{transform_indices = @transform_0, window_bounds = array<i64: 1, 4, 16, 128>}, {transform_indices = @transform_1, window_bounds = array<i64: 4>}, {transform_indices = @transform_2, window_bounds = array<i64: 1>}, {transform_indices = @transform_3, window_bounds = array<i64: 1, 4, 16, 128>}]} {
    %c0 = arith.constant 0 : index
    %c0_0 = arith.constant 0 : index
    %c0_1 = arith.constant 0 : index
    %c0_2 = arith.constant 0 : index
    %0 = vector.load %arg2[%c0, %c0_0, %c0_1, %c0_2] : memref<1x4x16x128xf32, #tpu.memory_space<vmem>>, vector<1x4x16x128xf32>
    %1 = vector.extract_strided_slice %0 {offsets = [0, 0, 0, 0], sizes = [1, 1, 16, 128], strides = [1, 1, 1, 1]} : vector<1x4x16x128xf32> to vector<1x1x16x128xf32>
    %c0_3 = arith.constant 0 : index
    %2 = memref.load %arg3[%c0_3] : memref<4xf32, #tpu.memory_space<smem>>
    %3 = vector.broadcast %2 : f32 to vector<1x1x16x128xf32>
    %4 = arith.mulf %1, %3 : vector<1x1x16x128xf32>
    %5 = vector.extract_strided_slice %0 {offsets = [0, 1, 0, 0], sizes = [1, 1, 16, 128], strides = [1, 1, 1, 1]} : vector<1x4x16x128xf32> to vector<1x1x16x128xf32>
    %c1 = arith.constant 1 : index
    %6 = memref.load %arg3[%c1] : memref<4xf32, #tpu.memory_space<smem>>
    %7 = vector.broadcast %6 : f32 to vector<1x1x16x128xf32>
    %8 = arith.mulf %5, %7 : vector<1x1x16x128xf32>
    %9 = arith.addf %4, %8 : vector<1x1x16x128xf32>
    %10 = vector.extract_strided_slice %0 {offsets = [0, 2, 0, 0], sizes = [1, 1, 16, 128], strides = [1, 1, 1, 1]} : vector<1x4x16x128xf32> to vector<1x1x16x128xf32>
    %c2 = arith.constant 2 : index
    %11 = memref.load %arg3[%c2] : memref<4xf32, #tpu.memory_space<smem>>
    %12 = vector.broadcast %11 : f32 to vector<1x1x16x128xf32>
    %13 = arith.mulf %10, %12 : vector<1x1x16x128xf32>
    %14 = arith.addf %9, %13 : vector<1x1x16x128xf32>
    %15 = vector.extract_strided_slice %0 {offsets = [0, 3, 0, 0], sizes = [1, 1, 16, 128], strides = [1, 1, 1, 1]} : vector<1x4x16x128xf32> to vector<1x1x16x128xf32>
    %c3 = arith.constant 3 : index
    %16 = memref.load %arg3[%c3] : memref<4xf32, #tpu.memory_space<smem>>
    %17 = vector.broadcast %16 : f32 to vector<1x1x16x128xf32>
    %18 = arith.mulf %15, %17 : vector<1x1x16x128xf32>
    %19 = arith.addf %14, %18 : vector<1x1x16x128xf32>
    %c0_4 = arith.constant 0 : index
    %20 = memref.load %arg4[%c0_4] : memref<1xf32, #tpu.memory_space<smem>>
    %21 = vector.broadcast %20 : f32 to vector<1x1x16x128xf32>
    %22 = arith.addf %19, %21 : vector<1x1x16x128xf32>
    %23 = arith.negf %22 : vector<1x1x16x128xf32>
    %24 = math.exp %23 : vector<1x1x16x128xf32>
    %cst = arith.constant 1.000000e+00 : f32
    %25 = vector.broadcast %cst : f32 to vector<1x1x16x128xf32>
    %26 = arith.addf %25, %24 : vector<1x1x16x128xf32>
    %27 = arith.divf %25, %26 : vector<1x1x16x128xf32>
    %28 = vector.broadcast %27 : vector<1x1x16x128xf32> to vector<1x4x16x128xf32>
    %29 = arith.mulf %0, %28 : vector<1x4x16x128xf32>
    %c0_5 = arith.constant 0 : index
    %c0_6 = arith.constant 0 : index
    %c0_7 = arith.constant 0 : index
    %c0_8 = arith.constant 0 : index
    %30 = vector.load %arg5[%c0_5, %c0_6, %c0_7, %c0_8] : memref<1x4x16x128xf32, #tpu.memory_space<vmem>>, vector<1x4x16x128xf32>
    tpu.vector_store %arg5[%c0_5, %c0_6, %c0_7, %c0_8], %29 {strides = array<i32>} : memref<1x4x16x128xf32, #tpu.memory_space<vmem>>, vector<1x4x16x128xf32>,
    return
  }
  func.func @transform_0(%arg0: i32, %arg1: i32) -> (i32, i32, i32, i32) {
    %c0_i32 = arith.constant 0 : i32
    %c0_i32_0 = arith.constant 0 : i32
    %c0_i32_1 = arith.constant 0 : i32
    return %arg0, %c0_i32, %arg1, %c0_i32_0 : i32, i32, i32, i32
  }
  func.func @transform_1(%arg0: i32, %arg1: i32) -> i32 {
    %c0_i32 = arith.constant 0 : i32
    %c0_i32_0 = arith.constant 0 : i32
    return %c0_i32 : i32
  }
  func.func @transform_2(%arg0: i32, %arg1: i32) -> i32 {
    %c0_i32 = arith.constant 0 : i32
    %c0_i32_0 = arith.constant 0 : i32
    return %c0_i32 : i32
  }
  func.func @transform_3(%arg0: i32, %arg1: i32) -> (i32, i32, i32, i32) {
    %c0_i32 = arith.constant 0 : i32
    %c0_i32_0 = arith.constant 0 : i32
    %c0_i32_1 = arith.constant 0 : i32
    return %arg0, %c0_i32, %arg1, %c0_i32_0 : i32, i32, i32, i32
  }
}

</mosaic_0001>

<llo_original>
// kernel: tpu_custom_call.1
$region0: #{tpu_custom_call.1}
  #allocation0 [shape = 'u32[]', space=smem, size = 0x4, offset = 0x4, fixed_abs, tag = 'smem constant byte address 0x4 - core index']
  #allocation1 [shape = 'u32[144,128]{1,0:T(1,128)}', space=vmem, size = 0x12000, scoped, tag = 'internal scratch']
  #allocation2 [shape = 'f32[1]{0:T(128)S(6)}', space=smem, size = 0x200, scoped, tag = 'scoped memory for tpu_custom_call.1']
  #allocation9 [shape = 's32[]', space=sflag, size = 0x4, offset = 0, fixed_abs, tag = 'sflag constant byte address 0x0 - dummy sync flag']
  #allocation11 [shape = 's32[]', space=sflag, size = 0x4, offset = 0, fixed_abs, tag = 'sflag constant byte address 0x0 - dummy sync flag']
  %s0 = inlined_call_operand.hbm [shape: f32[2,4,32,128], index: 0, kind: input, shape index: {}]
  %s1 = inlined_call_operand.vmem [shape: f32[4], index: 1, kind: input, shape index: {}]
  %s2 = inlined_call_operand.<no memory space> [shape: f32[1], index: 2, kind: input, shape index: {}]
  %s3 = inlined_call_operand.hbm [shape: f32[2,4,32,128], index: 3, kind: output, shape index: {}]
  %s4 = sld [smem:[#allocation0]]
  $region53: #{tpu_custom_call.1} parent=0
    _
  %s6 = ssub.s32 1, %s4
  %s7 = scalar_select 0, %s6, %s4
  %8 = sst [smem:[#allocation2]] %s2
  $region1: #{tpu_custom_call.1} parent=0
    #allocation3 [shape = 'u8[65536]{0}', space=vmem, size = 0x10000, scoped, tag = 'input window, operand 0']
    #allocation4 [shape = 's32[2]{0}', space=sflag, size = 0x8, scoped, tag = 'scoped memory for tpu_custom_call.1']
    #allocation5 [shape = 's32[2]{0}', space=sflag, size = 0x8, scoped, tag = 'scoped memory for tpu_custom_call.1']
    #allocation6 [shape = 's32[2]{0}', space=sflag, size = 0x8, scoped, tag = 'scoped memory for tpu_custom_call.1']
    #allocation7 [shape = 'u8[512]{0}', space=smem, size = 0x200, scoped, tag = 'input window, operand 1, single buffered']
    #allocation8 [shape = 'u8[65536]{0}', space=vmem, size = 0x10000, scoped, tag = 'output window, operand 0']
    %9 = vsyncpa [#allocation4], 0
    %s10 = scalar_lea.sflag [#allocation4], 1
    %11 = vsyncpa %s10, 0
    %12 = vsyncpa [#allocation6], 0
    %13 = vsyncpa [#allocation5], 0
    %s14 = scalar_lea.sflag [#allocation5], 1
    %15 = vsyncpa %s14, 0
    loop: start=0, step=1, limit=6
    $region2: #{tpu_custom_call.1} parent=1 // loop_pre_header
      _
    $region3: #{tpu_custom_call.1} parent=1 // loop_header
      %s17 = sphi 0, %s21
      %p18 = scmp.ge.s32.totalorder %s17, 6
      %s24 = sphi 0, %s36
      %s25 = sphi 0, %s32
      %s26 = sphi 0, %s24
      %s27 = sphi 0, %s25
      %s28 = sphi 0, %s26
      %s29 = sphi 0, %s27
      %s41 = sphi 0, %s43
      %s44 = sphi 0, %s41
      %s45 = sphi 0, %s44
      %s61 = sphi 0, %s45
      %s65 = sphi 0, %s65
      %s67 = sphi 0, %s65
      %s68 = sphi 0, %s67
      %s82 = sphi 0, %s68
      %s86 = sphi 0, %s86
      %s88 = sphi 0, %s86
      %s89 = sphi 0, %s88
      %s103 = sphi 0, %s89
      %s111 = sphi 0, %s113
      %s114 = sphi 0, %s111
      %s115 = sphi 0, %s114
      %s131 = sphi 0, %s115
    $region4: #{tpu_custom_call.1} parent=1 // loop_header_branch
      %20 = sbr.rel (%p18) target = $region8
    $region5: #{tpu_custom_call.1} parent=1 // loop_body
      %s22 = ssub.s32 %s17, 1
      %s23 = ssub.s32 %s17, 2
      %s30 = sadd.s32 1, %s25
      %p31 = scmp.ge.s32.totalorder %s30, 2
      %s32 = scalar_select %p31, 0, %s30
      %s33 = sadd.s32 1, %s24
      %s34 = scalar_select %p31, %s33, %s24
      %p35 = scmp.ge.s32.totalorder %s34, 2
      %s36 = scalar_select %p35, 0, %s34
      %s37 = ssub.s32 %s24, %s36
      %s38 = ssub.s32 %s25, %s32
      %s39 = sor.u32 %s37, %s38
      %p40 = scmp.eq.s32.totalorder %s39, 0
      %s42 = sadd.s32 %s41, 1
      %s43 = scalar_select %p40, %s41, %s42
      %p46 = pneg %p40
      %p47 = scmp.eq.s32.totalorder %s17, 3
      %p48 = por %p46, %p47
      %p49 = scmp.ne.s32.totalorder %s41, %s44
      %p50 = scmp.eq.s32.totalorder %s17, 0
      %p51 = por %p49, %p50
      %p52 = scmp.ne.s32.totalorder %s41, %s44
      %p53 = scmp.eq.s32.totalorder %s22, 3
      %p54 = por %p52, %p53
      %p55 = scmp.ne.s32.totalorder %s44, %s45
      %p56 = scmp.eq.s32.totalorder %s22, 0
      %p57 = por %p55, %p56
      %p58 = scmp.ne.s32.totalorder %s44, %s45
      %p59 = scmp.eq.s32.totalorder %s23, 3
      %p60 = por %p58, %p59
      %p62 = scmp.ne.s32.totalorder %s45, %s61
      %p63 = scmp.eq.s32.totalorder %s23, 0
      %p64 = por %p62, %p63
      %s66 = sadd.s32 %s65, 1
      %p69 = scmp.eq.s32.totalorder %s17, 3
      %p70 = scmp.ne.s32.totalorder %s65, %s67
      %p71 = scmp.eq.s32.totalorder %s17, 0
      %p72 = por %p70, %p71
      %p73 = scmp.ne.s32.totalorder %s65, %s67
      %p74 = scmp.eq.s32.totalorder %s22, 3
      %p75 = por %p73, %p74
      %p76 = scmp.ne.s32.totalorder %s67, %s68
      %p77 = scmp.eq.s32.totalorder %s22, 0
      %p78 = por %p76, %p77
      %p79 = scmp.ne.s32.totalorder %s67, %s68
      %p80 = scmp.eq.s32.totalorder %s23, 3
      %p81 = por %p79, %p80
      %p83 = scmp.ne.s32.totalorder %s68, %s82
      %p84 = scmp.eq.s32.totalorder %s23, 0
      %p85 = por %p83, %p84
      %s87 = sadd.s32 %s86, 1
      %p90 = scmp.eq.s32.totalorder %s17, 3
      %p91 = scmp.ne.s32.totalorder %s86, %s88
      %p92 = scmp.eq.s32.totalorder %s17, 0
      %p93 = por %p91, %p92
      %p94 = scmp.ne.s32.totalorder %s86, %s88
      %p95 = scmp.eq.s32.totalorder %s22, 3
      %p96 = por %p94, %p95
      %p97 = scmp.ne.s32.totalorder %s88, %s89
      %p98 = scmp.eq.s32.totalorder %s22, 0
      %p99 = por %p97, %p98
      %p100 = scmp.ne.s32.totalorder %s88, %s89
      %p101 = scmp.eq.s32.totalorder %s23, 3
      %p102 = por %p100, %p101
      %p104 = scmp.ne.s32.totalorder %s89, %s103
      %p105 = scmp.eq.s32.totalorder %s23, 0
      %p106 = por %p104, %p105
      %s107 = ssub.s32 %s24, %s36
      %s108 = ssub.s32 %s25, %s32
      %s109 = sor.u32 %s107, %s108
      %p110 = scmp.eq.s32.totalorder %s109, 0
      %s112 = sadd.s32 %s111, 1
      %s113 = scalar_select %p110, %s111, %s112
      %p116 = pneg %p110
      %p117 = scmp.eq.s32.totalorder %s17, 3
      %p118 = por %p116, %p117
      %p119 = scmp.ne.s32.totalorder %s111, %s114
      %p120 = scmp.eq.s32.totalorder %s17, 0
      %p121 = por %p119, %p120
      %p122 = scmp.ne.s32.totalorder %s111, %s114
      %p123 = scmp.eq.s32.totalorder %s22, 3
      %p124 = por %p122, %p123
      %p125 = scmp.ne.s32.totalorder %s114, %s115
      %p126 = scmp.eq.s32.totalorder %s22, 0
      %p127 = por %p125, %p126
      %p128 = scmp.ne.s32.totalorder %s114, %s115
      %p129 = scmp.eq.s32.totalorder %s23, 3
      %p130 = por %p128, %p129
      %p132 = scmp.ne.s32.totalorder %s115, %s131
      %p133 = scmp.eq.s32.totalorder %s23, 0
      %p134 = por %p132, %p133
      %p135 = scmp.le.s32.totalorder 1, %s17
      %p136 = scmp.lt.s32.totalorder %s17, 5
      %p137 = pnand %p135, %p136
      %p138 = pneg %p137
      // Predicated region
      $region9: #{tpu_custom_call.1} parent=5 // pred_check
        _
      $region10: #{tpu_custom_call.1} parent=5 // pred_check_branch
        %140 = sbr.rel (%p137) target = $region12
      $region11: #{tpu_custom_call.1} parent=5 // pred_region
        %s141 = ssub.s32 %s17, 1
        // Predicated region
        $region13: #{tpu_custom_call.1} parent=11 // pred_check
          %p142 = pneg %p78
        $region14: #{tpu_custom_call.1} parent=11 // pred_check_branch
          %144 = sbr.rel (%p142) target = $region16
        $region15: #{tpu_custom_call.1} parent=11 // pred_region
          %s146 = ssub.s32 16, 16
          %147 = vsyncadd [#allocation6], %s146
          %s149 = sshll.u32 %s1, 4
          %s150 = int_to_ptr.vmem [resolvable:$true] %s149
          %152 = dma.vmem_to_smem %s150, 16, [#allocation7], [#allocation6]
        $region16: #{tpu_custom_call.1} parent=11 // pred_fallthru
          _
        // Predicated region
        $region17: #{tpu_custom_call.1} parent=11 // pred_check
          %p153 = pneg %p99
        $region18: #{tpu_custom_call.1} parent=11 // pred_check_branch
          %155 = sbr.rel (%p153) target = $region20
        $region19: #{tpu_custom_call.1} parent=11 // pred_region
          _
        $region20: #{tpu_custom_call.1} parent=11 // pred_fallthru
          _
      $region12: #{tpu_custom_call.1} parent=5 // pred_fallthru
        _
      %p156 = scmp.lt.s32.totalorder %s17, 4
      // Predicated region
      $region21: #{tpu_custom_call.1} parent=5 // pred_check
        %p157 = pneg %p156
      $region22: #{tpu_custom_call.1} parent=5 // pred_check_branch
        %159 = sbr.rel (%p157) target = $region24
      $region23: #{tpu_custom_call.1} parent=5 // pred_region
        // Predicated region
        $region25: #{tpu_custom_call.1} parent=23 // pred_check
          %p160 = pneg %p51
        $region26: #{tpu_custom_call.1} parent=23 // pred_check_branch
          %162 = sbr.rel (%p160) target = $region28
        $region27: #{tpu_custom_call.1} parent=23 // pred_region
          #allocation10 [shape = 'u32[6]{0}', space=smem, size = 0x18, scoped, tag = 'DMA stride descriptor']
          %s163 = sand.u32 %s41, 1
          %s164 = scalar_lea.sflag [#allocation4], %s163
          %s165 = sand.u32 %s41, 1
          %s166 = smul.addr %s165, 64
          %s167 = scalar_lea.vmem [#allocation3], %s166
          %s168 = smul.u32 2, %s25
          %s170 = ssub.s32 1024, 1024
          %171 = vsyncadd %s164, %s170
          %s172 = smul.addr %s24, 16
          %s173 = sadd.s32 %s168, %s172
          %s174 = smul.addr %s173, 128
          %s175 = scalar_lea.hbm %s0, %s174
          %s177 = sshll.u32 1, 14
          %s178 = sxor.u32 4294967295, %s177
          %s180 = sld [smem:[#allocation0]]
          %s181 = sadd.s32 2, %s180
          %s183 = sshll.u32 7, 26
          %s184 = sxor.u32 4294967295, %s183
          %s185 = sand.u32 0, %s184
          %s186 = sshll.u32 %s181, 26
          %s187 = sor.u32 %s185, %s186
          %s188 = sshll.u32 %s167, 4
          %s189 = int_to_ptr.vmem [resolvable:$true] %s188
          %195 = sst [smem:[#allocation10]] 512
          %s196 = scalar_lea.smem [#allocation10], 1
          %197 = sst [smem:[%s196]] 256
          %s198 = scalar_lea.smem [#allocation10], 2
          %199 = sst [smem:[%s198]] 2
          %s200 = scalar_lea.smem [#allocation10], 3
          %201 = sst [smem:[%s200]] 128
          %s202 = scalar_lea.smem [#allocation10], 4
          %203 = sst [smem:[%s202]] 128
          %s204 = scalar_lea.smem [#allocation10], 5
          %205 = sst [smem:[%s204]] 8
          %207 = dma.general %s175, 1024, %s189, %s164, [#allocation9], [#allocation10], %s187, 0
        $region28: #{tpu_custom_call.1} parent=23 // pred_fallthru
          _
      $region24: #{tpu_custom_call.1} parent=5 // pred_fallthru
        _
      %p208 = scmp.le.s32.totalorder 1, %s17
      %p209 = scmp.lt.s32.totalorder %s17, 5
      %p210 = pnand %p208, %p209
      %p211 = pneg %p210
      // Predicated region
      $region29: #{tpu_custom_call.1} parent=5 // pred_check
        _
      $region30: #{tpu_custom_call.1} parent=5 // pred_check_branch
        %213 = sbr.rel (%p210) target = $region32
      $region31: #{tpu_custom_call.1} parent=5 // pred_region
        %s214 = ssub.s32 %s17, 1
        %s215 = sand.u32 %s44, 1
        %s216 = scalar_lea.sflag [#allocation4], %s215
        %s217 = sand.u32 %s44, 1
        %s218 = smul.addr %s217, 64
        %s219 = scalar_lea.vmem [#allocation3], %s218
        // Predicated region
        $region33: #{tpu_custom_call.1} parent=31 // pred_check
          %p220 = pneg %p57
        $region34: #{tpu_custom_call.1} parent=31 // pred_check_branch
          %222 = sbr.rel (%p220) target = $region36
        $region35: #{tpu_custom_call.1} parent=31 // pred_region
          %223 = dma.done %s216, 1024
        $region36: #{tpu_custom_call.1} parent=31 // pred_fallthru
          _
        // Predicated region
        $region37: #{tpu_custom_call.1} parent=31 // pred_check
          %p224 = pneg %p78
        $region38: #{tpu_custom_call.1} parent=31 // pred_check_branch
          %226 = sbr.rel (%p224) target = $region40
        $region39: #{tpu_custom_call.1} parent=31 // pred_region
          %227 = dma.done [#allocation6], 16
        $region40: #{tpu_custom_call.1} parent=31 // pred_fallthru
          _
        %228 = sfence
        %s229 = sand.u32 %s44, 1
        %s230 = scalar_lea.sflag [#allocation4], %s229
        %s231 = sand.u32 %s44, 1
        %s232 = smul.addr %s231, 64
        %s233 = scalar_lea.vmem [#allocation3], %s232
        %p234 = pneg %p57
        %p235 = pneg %p54
        %p236 = pneg %p78
        %p237 = pneg %p75
        %p238 = pneg %p99
        %p239 = pneg %p96
        %p240 = pneg %p127
        %p241 = pneg %p124
        %s242 = sand.u32 %s114, 1
        %s243 = scalar_lea.sflag [#allocation5], %s242
        %s244 = sand.u32 %s114, 1
        %s245 = smul.addr %s244, 64
        %s246 = scalar_lea.vmem [#allocation8], %s245
        %s247 = smul.u32 2, %s27
        %s248 = smul.u32 2, %s27
        %v249 = vld [vmem:[%s219] sm:$0xff]
        %v250 = vld [vmem:[%s219 + $0x8] sm:$0xff]
        %v251 = vld [vmem:[%s219 + $0x10] sm:$0xff]
        %v252 = vld [vmem:[%s219 + $0x18] sm:$0xff]
        %v253 = vld [vmem:[%s219 + $0x20] sm:$0xff]
        %v254 = vld [vmem:[%s219 + $0x28] sm:$0xff]
        %v255 = vld [vmem:[%s219 + $0x30] sm:$0xff]
        %v256 = vld [vmem:[%s219 + $0x38] sm:$0xff]
        %s257 = sld [smem:[#allocation7]]
        %v258 = vstv %s257
        %v259 = vmul.f32 %v249, %v258
        %v260 = vmul.f32 %v250, %v258
        %s261 = sld [smem:[#allocation7 + $0x1]]
        %v262 = vstv %s261
        %v263 = vmul.f32 %v251, %v262
        %v264 = vmul.f32 %v252, %v262
        %v265 = vadd.f32 %v259, %v263
        %v266 = vadd.f32 %v260, %v264
        %s267 = sld [smem:[#allocation7 + $0x2]]
        %v268 = vstv %s267
        %v269 = vmul.f32 %v253, %v268
        %v270 = vmul.f32 %v254, %v268
        %v271 = vadd.f32 %v265, %v269
        %v272 = vadd.f32 %v266, %v270
        %s273 = sld [smem:[#allocation7 + $0x3]]
        %v274 = vstv %s273
        %v275 = vmul.f32 %v255, %v274
        %v276 = vmul.f32 %v256, %v274
        %v277 = vadd.f32 %v271, %v275
        %v278 = vadd.f32 %v272, %v276
        %s279 = sld [smem:[#allocation2]]
        %v280 = vstv %s279
        %v281 = vadd.f32 %v277, %v280
        %v282 = vadd.f32 %v278, %v280
        %v283 = vxor.u32 %v281, 2147483648
        %v284 = vxor.u32 %v282, 2147483648
        %v285 = vmul.f32 %v283, 1.442695
        %v286 = vpow.pop %v285
        %v287 = vmul.f32 %v284, 1.442695
        %v288 = vpow.pop %v287
        %v289 = vadd.f32 %v286, 1.0
        %v290 = vadd.f32 %v288, 1.0
        %v291 = vrcp.pop %v289
        %v292 = vmul.f32 1.0, %v291
        %v293 = vrcp.pop %v290
        %v294 = vmul.f32 1.0, %v293
        %v295 = vmul.f32 %v249, %v292
        %v296 = vmul.f32 %v250, %v294
        %v297 = vmul.f32 %v251, %v292
        %v298 = vmul.f32 %v252, %v294
        %v299 = vmul.f32 %v253, %v292
        %v300 = vmul.f32 %v254, %v294
        %v301 = vmul.f32 %v255, %v292
        %v302 = vmul.f32 %v256, %v294
        %303 = vst [vmem:[%s246] sm:$0xff] %v295
        %304 = vst [vmem:[%s246 + $0x8] sm:$0xff] %v296
        %305 = vst [vmem:[%s246 + $0x10] sm:$0xff] %v297
        %306 = vst [vmem:[%s246 + $0x18] sm:$0xff] %v298
        %307 = vst [vmem:[%s246 + $0x20] sm:$0xff] %v299
        %308 = vst [vmem:[%s246 + $0x28] sm:$0xff] %v300
        %309 = vst [vmem:[%s246 + $0x30] sm:$0xff] %v301
        %310 = vst [vmem:[%s246 + $0x38] sm:$0xff] %v302
        %s311 = sand.u32 %s114, 1
        %s312 = scalar_lea.sflag [#allocation5], %s311
        %s313 = sand.u32 %s114, 1
        %s314 = smul.addr %s313, 64
        %s315 = scalar_lea.vmem [#allocation8], %s314
        // Predicated region
        $region41: #{tpu_custom_call.1} parent=31 // pred_check
          %p316 = pneg %p124
        $region42: #{tpu_custom_call.1} parent=31 // pred_check_branch
          %318 = sbr.rel (%p316) target = $region44
        $region43: #{tpu_custom_call.1} parent=31 // pred_region
          #allocation12 [shape = 'u32[6]{0}', space=smem, size = 0x18, scoped, tag = 'DMA stride descriptor']
          %s319 = smul.u32 2, %s27
          %s321 = ssub.s32 1024, 1024
          %322 = vsyncadd %s312, %s321
          %s323 = smul.addr %s26, 16
          %s324 = sadd.s32 %s319, %s323
          %s325 = smul.addr %s324, 128
          %s326 = scalar_lea.hbm %s3, %s325
          %s328 = sshll.u32 1, 14
          %s329 = sxor.u32 4294967295, %s328
          %s332 = sshll.u32 7, 18
          %s333 = sxor.u32 4294967295, %s332
          %s334 = sand.u32 0, %s333
          %s336 = sor.u32 %s334, 0
          %s338 = sshll.u32 3, 24
          %s339 = sxor.u32 4294967295, %s338
          %s340 = sand.u32 %s336, %s339
          %s342 = sor.u32 %s340, 0
          %s343 = sshll.u32 %s315, 4
          %s344 = int_to_ptr.vmem [resolvable:$true] %s343
          %350 = sst [smem:[#allocation12]] 256
          %s351 = scalar_lea.smem [#allocation12], 1
          %352 = sst [smem:[%s351]] 512
          %s353 = scalar_lea.smem [#allocation12], 2
          %354 = sst [smem:[%s353]] 2
          %s355 = scalar_lea.smem [#allocation12], 3
          %356 = sst [smem:[%s355]] 128
          %s357 = scalar_lea.smem [#allocation12], 4
          %358 = sst [smem:[%s357]] 128
          %s359 = scalar_lea.smem [#allocation12], 5
          %360 = sst [smem:[%s359]] 8
          %362 = dma.general %s344, 1024, %s326, %s312, [#allocation11], [#allocation12], %s342, 0
        $region44: #{tpu_custom_call.1} parent=31 // pred_fallthru
          _
      $region32: #{tpu_custom_call.1} parent=5 // pred_fallthru
        _
      %p363 = scmp.le.s32.totalorder 2, %s17
      // Predicated region
      $region45: #{tpu_custom_call.1} parent=5 // pred_check
        %p364 = pneg %p363
      $region46: #{tpu_custom_call.1} parent=5 // pred_check_branch
        %366 = sbr.rel (%p364) target = $region48
      $region47: #{tpu_custom_call.1} parent=5 // pred_region
        %s367 = ssub.s32 %s17, 2
        // Predicated region
        $region49: #{tpu_custom_call.1} parent=47 // pred_check
          %p368 = pneg %p130
        $region50: #{tpu_custom_call.1} parent=47 // pred_check_branch
          %370 = sbr.rel (%p368) target = $region52
        $region51: #{tpu_custom_call.1} parent=47 // pred_region
          %s371 = sand.u32 %s115, 1
          %s372 = scalar_lea.sflag [#allocation5], %s371
          %s373 = sand.u32 %s115, 1
          %s374 = smul.addr %s373, 64
          %s375 = scalar_lea.vmem [#allocation8], %s374
          %376 = dma.done %s372, 1024
        $region52: #{tpu_custom_call.1} parent=47 // pred_fallthru
          _
      $region48: #{tpu_custom_call.1} parent=5 // pred_fallthru
        _
    $region6: #{tpu_custom_call.1} parent=1 // loop_footer
      %s21 = sadd.s32 1, %s17
    $region7: #{tpu_custom_call.1} parent=1 // loop_footer_branch
      %16 = sbr.rel target = $region3
    $region8: #{tpu_custom_call.1} parent=1 // loop_exit
      _
    %377 = vsyncpa [#allocation4], 1
    %s378 = scalar_lea.sflag [#allocation4], 1
    %379 = vsyncpa %s378, 1
    %380 = vsyncpa [#allocation5], 1
    %s381 = scalar_lea.sflag [#allocation5], 1
    %382 = vsyncpa %s381, 1
    %383 = vsyncpa [#allocation6], 1
    %s384 = scalar_lea.sflag [#allocation6], 1
    %385 = vsyncpa %s384, 1

</llo_original>
